<compile_context>
chip_gen: v7x
topology: tpu7x:2x2x1
jax: 0.10.0
libtpu: 0.0.40
codegen_flags: <defaults>
</compile_context>

<pallas_src>
import math
from functools import partial

import jax
import jax.numpy as jnp
from jax import lax
from jax.experimental import pallas as pl
from jax.experimental.pallas import tpu as pltpu

_LANE = 128
_VMEM_LIMIT = 48 * 1024 * 1024   # < v7x 64 MiB physical; plenty on v5e/v6e (128 MiB)


def _round_up(x: int, m: int) -> int:
    return ((x + m - 1) // m) * m


def _choose_block(total: int, target: int):
    """Pick a lane-block size (multiple of 128, <= target) with bounded padding waste.
    Returns (block, padded_total) with padded_total % block == 0."""
    total_u = _round_up(max(total, 1), _LANE)
    if total_u <= target:
        return total_u, total_u
    blk = (max(target, _LANE) // _LANE) * _LANE
    while blk >= _LANE:
        padded = _round_up(total_u, blk)
        if padded - total_u <= total_u // 4:      # accept <=25% waste for bigger blocks
            return blk, padded
        blk -= _LANE
    return _LANE, total_u                          # unreachable (blk=128 has zero waste)


# ----------------------------------------------------------------------------
# Kernel 1: y_f[b,h,f] = sum_c u_f[b,c,f] * conj(v_f[h,c,f])   (packed re/im)
# ----------------------------------------------------------------------------
def _freq_contract_kernel(u_ref, v_ref, y_ref):
    # u_ref: (TB_BLK, 2*C, Fb)  rows [re_0..re_{C-1}, im_0..im_{C-1}]
    # v_ref: (2, C, H, Fb)      axis 0 = [re, im]  (grid-invariant filter block)
    # y_ref: (TB_BLK, 2, H, Fb)
    C, H, fb = v_ref.shape[1], v_ref.shape[2], v_ref.shape[3]

    def row(b, carry):
        ub = u_ref[b]                              # (2C, Fb) one dynamic-index load per row
        yr = jnp.zeros((H, fb), jnp.float32)
        yi = jnp.zeros((H, fb), jnp.float32)
        for c in range(C):                         # static, C is small
            ur = ub[c:c + 1, :]                    # (1, Fb) -> sublane-broadcast in the FMA
            ui = ub[C + c:C + c + 1, :]
            vr = v_ref[0, c]                       # (H, Fb) dense sublane tile
            vi = v_ref[1, c]
            # (ur + i*ui) * (vr - i*vi) = (ur*vr + ui*vi) + i*(ui*vr - ur*vi)
            yr = yr + vr * ur + vi * ui
            yi = yi + vr * ui - vi * ur
        y_ref[b, 0] = yr
        y_ref[b, 1] = yi
        return carry

    lax.fori_loop(0, u_ref.shape[0], row, 0, unroll=2)


def freq_contract(u_pk, v_pk, *, tb_blk, f_blk):
    TBp, twoC, Fp = u_pk.shape
    C, H = v_pk.shape[1], v_pk.shape[2]
    # lane axis outermost: the filter block index depends only on f, so it stays resident
    # across the inner (t*b) sweep.
    grid = (Fp // f_blk, TBp // tb_blk)
    return pl.pallas_call(
        _freq_contract_kernel,
        out_shape=jax.ShapeDtypeStruct((TBp, 2, H, Fp), jnp.float32),
        grid=grid,
        in_specs=[
            pl.BlockSpec((tb_blk, twoC, f_blk), lambda f, b: (b, 0, f)),
            pl.BlockSpec((2, C, H, f_blk), lambda f, b: (0, 0, 0, f)),
        ],
        out_specs=pl.BlockSpec((tb_blk, 2, H, f_blk), lambda f, b: (b, 0, 0, f)),
        compiler_params=pltpu.CompilerParams(
            dimension_semantics=("parallel", "parallel"),
            vmem_limit_bytes=_VMEM_LIMIT),
    )(u_pk, v_pk)


# ----------------------------------------------------------------------------
# Kernel 2: post_conv + residual 'contract'
#   a   = log1p(|y|)                               (|irfft| + NLReLU, beta=1)
#   a   = a * (k + alpha/size * bandsum(a^2))^(-beta)   (LocalResponseNorm over channels)
#   out = a * sum_c u                              (residual 'contract', reduced in-kernel)
# ----------------------------------------------------------------------------
def _post_kernel(y_ref, u_ref, o_ref, *, k, coef, beta, lo, hi):
    # y_ref: (TB_BLK, H, Nb) raw irfft output, u_ref: (TB_BLK, Cx, Nb), o_ref: (TB_BLK, H, Nb)
    H = y_ref.shape[1]

    def row(b, carry):
        yb = y_ref[b]                                   # (H, Nb)
        ub = u_ref[b]                                   # (Cx, Nb)
        r = jnp.sum(ub, axis=0, keepdims=True)          # (1, Nb) residual factor
        a = jnp.log1p(jnp.abs(yb))                      # |.| then NLReLU (EUP)
        a2 = (a * a) * coef                             # pre-scaled by alpha/size
        # LRN banded channel-window sum via prefix sums on the VPU (no per-row MXU dots).
        cs = [a2[0:1, :]]
        for j in range(1, H):                           # static, H is small
            cs.append(cs[-1] + a2[j:j + 1, :])
        wins = []
        for c in range(H):
            w = cs[hi[c]]
            if lo[c] > 0:
                w = w - cs[lo[c] - 1]
            wins.append(w)
        base = k + jnp.concatenate(wins, axis=0)        # (H, Nb), > 0 (k = 1)
        if beta == 0.75:
            inv = lax.rsqrt(base)                       # base**-0.75 = rsqrt*sqrt(rsqrt)
            scale = inv * jnp.sqrt(inv)
        else:
            scale = jnp.exp(-beta * jnp.log(base))
        o_ref[b] = (a * scale) * r
        return carry

    lax.fori_loop(0, y_ref.shape[0], row, 0, unroll=2)


def post_process(y, udec, *, k, coef, beta, lo, hi, tb_blk, n_blk):
    TBp, H, Np = y.shape
    Cx = udec.shape[1]
    grid = (TBp // tb_blk, Np // n_blk)
    kernel = partial(_post_kernel, k=float(k), coef=float(coef), beta=float(beta),
                     lo=tuple(lo), hi=tuple(hi))
    return pl.pallas_call(
        kernel,
        out_shape=jax.ShapeDtypeStruct((TBp, H, Np), jnp.float32),
        grid=grid,
        in_specs=[
            pl.BlockSpec((tb_blk, H, n_blk), lambda b, t: (b, 0, t)),
            pl.BlockSpec((tb_blk, Cx, n_blk), lambda b, t: (b, 0, t)),
        ],
        out_specs=pl.BlockSpec((tb_blk, H, n_blk), lambda b, t: (b, 0, t)),
        compiler_params=pltpu.CompilerParams(
            dimension_semantics=("parallel", "parallel"),
            vmem_limit_bytes=_VMEM_LIMIT),
    )(y, udec)


# ----------------------------------------------------------------------------
# Module wrapper (glue: padding, rearranges, rfft/irfft)
# ----------------------------------------------------------------------------
class ResidualConv1dPallas:
    """ResidualConv1d with conv_mode='fftconv', residual_connection_type='contract',
    norm_type='LocalResponseNorm'."""

    def __init__(self, in_channels, out_channels, kernel_size, stride=1, n_fft=None):
        self.in_channels = in_channels
        self.out_channels = out_channels
        self.kernel_size = kernel_size
        self.stride = stride
        # signal.get_nfft(kernel_size, n_fft): use given n_fft (>= kernel_size),
        # else next power of two of kernel_size.
        if n_fft is None or n_fft < kernel_size:
            n_fft = pl.next_power_of_2(kernel_size)
        self.n_fft = int(n_fft)
        assert self.n_fft >= 2
        # LocalResponseNorm hyperparameters (PyTorch defaults).
        # TODO(synk): CustomNormLayer's exact LRN `size` is assumed = num_channels.
        # TODO(synk): NLReLU beta assumed = 1 (act = log1p(relu(x))).
        self.lrn_size = out_channels
        self.lrn_alpha = 1e-4
        self.lrn_beta = 0.75
        self.lrn_k = 1.0
        c = jnp.arange(out_channels)[:, None]
        j = jnp.arange(out_channels)[None, :]
        self.lrn_mask = ((j >= c - self.lrn_size // 2) &
                         (j <= c + (self.lrn_size - 1) // 2)).astype(jnp.float32)
        # static band-window bounds for the in-kernel prefix-sum LRN
        self.lrn_lo = tuple(max(0, cc - self.lrn_size // 2) for cc in range(out_channels))
        self.lrn_hi = tuple(min(out_channels - 1, cc + (self.lrn_size - 1) // 2)
                            for cc in range(out_channels))

    def __call__(self, X, filters):
        B, Cx, n = X.shape
        H, C, K = filters.shape
        assert C == self.in_channels and H == self.out_channels
        n_fft = self.n_fft

        # PadForConv: right-pad (reflect) so length is a multiple of n_fft.
        # TODO(synk): reflect padding requires (L - n) < n, same as PyTorch PadForConv.
        L = int(math.ceil(n / n_fft)) * n_fft
        if L > n:
            X = jnp.pad(X, ((0, 0), (0, 0), (0, L - n)), mode="reflect")
        t = L // n_fft

        # rearrange 'b c (n t) -> (t b) c n'
        # TODO(synk): this strided rearrange (and its inverse) stays in XLA because the
        # plain-JAX rfft/irfft needs the rearranged layout; not foldable into BlockSpecs.
        u = X.reshape(B, Cx, n_fft, t).transpose(3, 0, 1, 2).reshape(t * B, Cx, n_fft)

        residual = Cx - self.in_channels
        u_conv = u[:, residual:, :]

        Uf = jnp.fft.rfft(u_conv.astype(jnp.float32), n=n_fft, axis=-1)   # (TB, C, F)
        Vf = jnp.fft.rfft(filters.astype(jnp.float32), n=n_fft, axis=-1)  # (H, C, F)

        TB = t * B
        F = Uf.shape[-1]
        Fm = F - 1           # Pallas handles bins [0, n_fft//2); the last bin is one column in JAX

        # block sizes (pad totals up to a multiple of the block; never collapse to tiny blocks)
        tb_blk = max(1, min(TB, 16))
        f_blk, Fp = _choose_block(Fm, 512)
        TBp = _round_up(TB, tb_blk)
        # keep >=2 parallel grid blocks when possible (v7x has 2 TensorCores)
        if (Fp // f_blk) * (TBp // tb_blk) < 2:
            if TB >= 2:
                tb_blk = (TB + 1) // 2
                TBp = _round_up(TB, tb_blk)
            elif f_blk >= 2 * _LANE and f_blk % (2 * _LANE) == 0:
                f_blk //= 2

        # Pack re/im sublane-dense:  u -> (TB, 2C, Fm),  v -> (2, C, H, Fm).
        Upk = jnp.concatenate([jnp.real(Uf[..., :Fm]), jnp.imag(Uf[..., :Fm])],
                              axis=1).astype(jnp.float32)                       # (TB, 2C, Fm)
        Vpk = jnp.stack([jnp.real(Vf[..., :Fm]), jnp.imag(Vf[..., :Fm])], axis=0)  # (2, H, C, Fm)
        Vpk = jnp.transpose(Vpk, (0, 2, 1, 3)).astype(jnp.float32)                 # (2, C, H, Fm)
        Upk = jnp.pad(Upk, ((0, TBp - TB), (0, 0), (0, Fp - Fm)))
        Vpk = jnp.pad(Vpk, ((0, 0), (0, 0), (0, 0), (0, Fp - Fm)))

        Ypk = freq_contract(Upk, Vpk, tb_blk=tb_blk, f_blk=f_blk)         # (TBp, 2, H, Fp)
        Yf_main = lax.complex(Ypk[:TB, 0, :, :Fm], Ypk[:TB, 1, :, :Fm])
        # Nyquist / last rfft bin: a single column, contracted in plain JAX.
        Yf_last = jnp.einsum("bc,hc->bh", Uf[..., Fm], jnp.conj(Vf[..., Fm]))
        Yf = jnp.concatenate([Yf_main, Yf_last[:, :, None]], axis=-1)     # (TB, H, F)
        y = jnp.fft.irfft(Yf, n=n_fft, axis=-1)                           # (TB, H, n_fft)

        # TODO(synk): DownsampleLayer assumed to be plain decimation X[..., ::stride];
        # for stride > 1 the decimation stays in XLA (strided lane reads in-kernel are XLU-heavy).
        if self.stride > 1:
            y = y[..., ::self.stride]
            udec = u[..., ::self.stride]
        else:
            udec = u
        y = y.astype(jnp.float32)
        udec = udec.astype(jnp.float32)

        Nd = y.shape[-1]
        n_blk, Np = _choose_block(Nd, 1024)
        y = jnp.pad(y, ((0, TBp - TB), (0, 0), (0, Np - Nd)))
        udec = jnp.pad(udec, ((0, TBp - TB), (0, 0), (0, Np - Nd)))

        z = post_process(y, udec,
                         k=self.lrn_k, coef=self.lrn_alpha / self.lrn_size,
                         beta=self.lrn_beta, lo=self.lrn_lo, hi=self.lrn_hi,
                         tb_blk=tb_blk, n_blk=n_blk)                      # (TBp, H, Np)
        z = z[:TB, :, :Nd]

        # rearrange '(t b) h n -> b h (n t)'
        z = z.reshape(t, B, H, Nd).transpose(1, 2, 3, 0).reshape(B, H, Nd * t)
        m = int(math.ceil(n / self.stride))
        return z[..., :m]


# ----------------------------------------------------------------------------
# Pure-JAX reference (same math, no Pallas) for a sanity check.
# ----------------------------------------------------------------------------
def reference_forward(mod, X, filters):
    B, Cx, n = X.shape
    H = filters.shape[0]
    n_fft = mod.n_fft
    L = int(math.ceil(n / n_fft)) * n_fft
    if L > n:
        X = jnp.pad(X, ((0, 0), (0, 0), (0, L - n)), mode="reflect")
    t = L // n_fft
    u = X.reshape(B, Cx, n_fft, t).transpose(3, 0, 1, 2).reshape(t * B, Cx, n_fft)
    residual = Cx - mod.in_channels
    Uf = jnp.fft.rfft(u[:, residual:, :], n=n_fft, axis=-1)
    Vf = jnp.fft.rfft(filters, n=n_fft, axis=-1)
    Yf = jnp.einsum("bcn,hcn->bhn", Uf, jnp.conj(Vf))
    y = jnp.abs(jnp.fft.irfft(Yf, n=n_fft, axis=-1))
    y = y[..., ::mod.stride]
    r = u[..., ::mod.stride]
    a = jnp.log1p(jnp.maximum(y, 0.0))
    win = jnp.einsum("hj,bjn->bhn", mod.lrn_mask, a * a)
    div = (mod.lrn_k + mod.lrn_alpha / mod.lrn_size * win) ** mod.lrn_beta
    a = a / div
    z = a * jnp.sum(r, axis=1, keepdims=True)
    Nd = z.shape[-1]
    z = z.reshape(t, B, H, Nd).transpose(1, 2, 3, 0).reshape(B, H, Nd * t)
    m = int(math.ceil(n / mod.stride))
    return z[..., :m]


if __name__ == "__main__":
    B, C_in, H, K, n_fft, n = 2, 4, 8, 8, 16, 32   # length n = 2 * n_fft -> t = 2
    key = jax.random.PRNGKey(0)
    kx, kf = jax.random.split(key)
    X = jax.random.normal(kx, (B, C_in, n), dtype=jnp.float32)
    filters = 0.1 * jax.random.normal(kf, (H, C_in, K), dtype=jnp.float32)

    mod = ResidualConv1dPallas(in_channels=C_in, out_channels=H,
                               kernel_size=K, stride=1, n_fft=n_fft)

    out = mod(X, filters)
    out = jax.block_until_ready(out)

    ref = jax.block_until_ready(reference_forward(mod, X, filters))
    assert out.shape == (B, H, n), out.shape
    assert jnp.allclose(out, ref, rtol=1e-3, atol=1e-3), float(jnp.max(jnp.abs(out - ref)))

    print("KERNEL_OK")
</pallas_src>

<mosaic_0001>
module attributes {stable_mosaic.version = 11 : i64} {
  func.func @_freq_contract_kernel(%arg0: i32, %arg1: i32, %arg2: memref<2x8x128xf32, #tpu.memory_space<vmem>>, %arg3: memref<2x4x8x128xf32, #tpu.memory_space<vmem>>, %arg4: memref<2x2x8x128xf32, #tpu.memory_space<vmem>>) attributes {dimension_semantics = [#tpu.dimension_semantics<parallel>, #tpu.dimension_semantics<parallel>], iteration_bounds = array<i64: 1, 2>, scalar_prefetch = 0 : i64, scratch_operands = 0 : i64, tpu.core_type = #tpu.core_type<tc>, window_params = [{transform_indices = @transform_0, window_bounds = array<i64: 2, 8, 128>}, {transform_indices = @transform_1, window_bounds = array<i64: 2, 4, 8, 128>}, {transform_indices = @transform_2, window_bounds = array<i64: 2, 2, 8, 128>}]} {
    %c0_i32 = arith.constant 0 : i32
    %0 = arith.index_cast %c0_i32 : i32 to index
    %c0 = arith.constant 0 : index
    %c0_0 = arith.constant 0 : index
    %1 = vector.load %arg2[%0, %c0, %c0_0] : memref<2x8x128xf32, #tpu.memory_space<vmem>>, vector<1x8x128xf32>
    %2 = vector.shape_cast %1 : vector<1x8x128xf32> to vector<8x128xf32>
    %cst = arith.constant 0.000000e+00 : f32
    %3 = vector.broadcast %cst : f32 to vector<8x128xf32>
    %cst_1 = arith.constant 0.000000e+00 : f32
    %4 = vector.broadcast %cst_1 : f32 to vector<8x128xf32>
    %5 = vector.extract_strided_slice %2 {offsets = [0, 0], sizes = [1, 128], strides = [1, 1]} : vector<8x128xf32> to vector<1x128xf32>
    %6 = vector.extract_strided_slice %2 {offsets = [4, 0], sizes = [1, 128], strides = [1, 1]} : vector<8x128xf32> to vector<1x128xf32>
    %c0_2 = arith.constant 0 : index
    %c0_3 = arith.constant 0 : index
    %c0_4 = arith.constant 0 : index
    %c0_5 = arith.constant 0 : index
    %7 = vector.load %arg3[%c0_2, %c0_3, %c0_4, %c0_5] : memref<2x4x8x128xf32, #tpu.memory_space<vmem>>, vector<1x1x8x128xf32>
    %8 = vector.shape_cast %7 : vector<1x1x8x128xf32> to vector<8x128xf32>
    %c1 = arith.constant 1 : index
    %c0_6 = arith.constant 0 : index
    %c0_7 = arith.constant 0 : index
    %c0_8 = arith.constant 0 : index
    %9 = vector.load %arg3[%c1, %c0_6, %c0_7, %c0_8] : memref<2x4x8x128xf32, #tpu.memory_space<vmem>>, vector<1x1x8x128xf32>
    %10 = vector.shape_cast %9 : vector<1x1x8x128xf32> to vector<8x128xf32>
    %11 = vector.broadcast %5 : vector<1x128xf32> to vector<8x128xf32>
    %12 = arith.mulf %8, %11 : vector<8x128xf32>
    %13 = arith.addf %3, %12 : vector<8x128xf32>
    %14 = vector.broadcast %6 : vector<1x128xf32> to vector<8x128xf32>
    %15 = arith.mulf %10, %14 : vector<8x128xf32>
    %16 = arith.addf %13, %15 : vector<8x128xf32>
    %17 = vector.broadcast %6 : vector<1x128xf32> to vector<8x128xf32>
    %18 = arith.mulf %8, %17 : vector<8x128xf32>
    %19 = arith.addf %4, %18 : vector<8x128xf32>
    %20 = vector.broadcast %5 : vector<1x128xf32> to vector<8x128xf32>
    %21 = arith.mulf %10, %20 : vector<8x128xf32>
    %22 = arith.subf %19, %21 : vector<8x128xf32>
    %23 = vector.extract_strided_slice %2 {offsets = [1, 0], sizes = [1, 128], strides = [1, 1]} : vector<8x128xf32> to vector<1x128xf32>
    %24 = vector.extract_strided_slice %2 {offsets = [5, 0], sizes = [1, 128], strides = [1, 1]} : vector<8x128xf32> to vector<1x128xf32>
    %c0_9 = arith.constant 0 : index
    %c1_10 = arith.constant 1 : index
    %c0_11 = arith.constant 0 : index
    %c0_12 = arith.constant 0 : index
    %25 = vector.load %arg3[%c0_9, %c1_10, %c0_11, %c0_12] : memref<2x4x8x128xf32, #tpu.memory_space<vmem>>, vector<1x1x8x128xf32>
    %26 = vector.shape_cast %25 : vector<1x1x8x128xf32> to vector<8x128xf32>
    %c1_13 = arith.constant 1 : index
    %c1_14 = arith.constant 1 : index
    %c0_15 = arith.constant 0 : index
    %c0_16 = arith.constant 0 : index
    %27 = vector.load %arg3[%c1_13, %c1_14, %c0_15, %c0_16] : memref<2x4x8x128xf32, #tpu.memory_space<vmem>>, vector<1x1x8x128xf32>
    %28 = vector.shape_cast %27 : vector<1x1x8x128xf32> to vector<8x128xf32>
    %29 = vector.broadcast %23 : vector<1x128xf32> to vector<8x128xf32>
    %30 = arith.mulf %26, %29 : vector<8x128xf32>
    %31 = arith.addf %16, %30 : vector<8x128xf32>
    %32 = vector.broadcast %24 : vector<1x128xf32> to vector<8x128xf32>
    %33 = arith.mulf %28, %32 : vector<8x128xf32>
    %34 = arith.addf %31, %33 : vector<8x128xf32>
    %35 = vector.broadcast %24 : vector<1x128xf32> to vector<8x128xf32>
    %36 = arith.mulf %26, %35 : vector<8x128xf32>
    %37 = arith.addf %22, %36 : vector<8x128xf32>
    %38 = vector.broadcast %23 : vector<1x128xf32> to vector<8x128xf32>
    %39 = arith.mulf %28, %38 : vector<8x128xf32>
    %40 = arith.subf %37, %39 : vector<8x128xf32>
    %41 = vector.extract_strided_slice %2 {offsets = [2, 0], sizes = [1, 128], strides = [1, 1]} : vector<8x128xf32> to vector<1x128xf32>
    %42 = vector.extract_strided_slice %2 {offsets = [6, 0], sizes = [1, 128], strides = [1, 1]} : vector<8x128xf32> to vector<1x128xf32>
    %c0_17 = arith.constant 0 : index
    %c2 = arith.constant 2 : index
    %c0_18 = arith.constant 0 : index
    %c0_19 = arith.constant 0 : index
    %43 = vector.load %arg3[%c0_17, %c2, %c0_18, %c0_19] : memref<2x4x8x128xf32, #tpu.memory_space<vmem>>, vector<1x1x8x128xf32>
    %44 = vector.shape_cast %43 : vector<1x1x8x128xf32> to vector<8x128xf32>
    %c1_20 = arith.constant 1 : index
    %c2_21 = arith.constant 2 : index
    %c0_22 = arith.constant 0 : index
    %c0_23 = arith.constant 0 : index
    %45 = vector.load %arg3[%c1_20, %c2_21, %c0_22, %c0_23] : memref<2x4x8x128xf32, #tpu.memory_space<vmem>>, vector<1x1x8x128xf32>
    %46 = vector.shape_cast %45 : vector<1x1x8x128xf32> to vector<8x128xf32>
    %47 = vector.broadcast %41 : vector<1x128xf32> to vector<8x128xf32>
    %48 = arith.mulf %44, %47 : vector<8x128xf32>
    %49 = arith.addf %34, %48 : vector<8x128xf32>
    %50 = vector.broadcast %42 : vector<1x128xf32> to vector<8x128xf32>
    %51 = arith.mulf %46, %50 : vector<8x128xf32>
    %52 = arith.addf %49, %51 : vector<8x128xf32>
    %53 = vector.broadcast %42 : vector<1x128xf32> to vector<8x128xf32>
    %54 = arith.mulf %44, %53 : vector<8x128xf32>
    %55 = arith.addf %40, %54 : vector<8x128xf32>
    %56 = vector.broadcast %41 : vector<1x128xf32> to vector<8x128xf32>
    %57 = arith.mulf %46, %56 : vector<8x128xf32>
    %58 = arith.subf %55, %57 : vector<8x128xf32>
    %59 = vector.extract_strided_slice %2 {offsets = [3, 0], sizes = [1, 128], strides = [1, 1]} : vector<8x128xf32> to vector<1x128xf32>
    %60 = vector.extract_strided_slice %2 {offsets = [7, 0], sizes = [1, 128], strides = [1, 1]} : vector<8x128xf32> to vector<1x128xf32>
    %c0_24 = arith.constant 0 : index
    %c3 = arith.constant 3 : index
    %c0_25 = arith.constant 0 : index
    %c0_26 = arith.constant 0 : index
    %61 = vector.load %arg3[%c0_24, %c3, %c0_25, %c0_26] : memref<2x4x8x128xf32, #tpu.memory_space<vmem>>, vector<1x1x8x128xf32>
    %62 = vector.shape_cast %61 : vector<1x1x8x128xf32> to vector<8x128xf32>
    %c1_27 = arith.constant 1 : index
    %c3_28 = arith.constant 3 : index
    %c0_29 = arith.constant 0 : index
    %c0_30 = arith.constant 0 : index
    %63 = vector.load %arg3[%c1_27, %c3_28, %c0_29, %c0_30] : memref<2x4x8x128xf32, #tpu.memory_space<vmem>>, vector<1x1x8x128xf32>
    %64 = vector.shape_cast %63 : vector<1x1x8x128xf32> to vector<8x128xf32>
    %65 = vector.broadcast %59 : vector<1x128xf32> to vector<8x128xf32>
    %66 = arith.mulf %62, %65 : vector<8x128xf32>
    %67 = arith.addf %52, %66 : vector<8x128xf32>
    %68 = vector.broadcast %60 : vector<1x128xf32> to vector<8x128xf32>
    %69 = arith.mulf %64, %68 : vector<8x128xf32>
    %70 = arith.addf %67, %69 : vector<8x128xf32>
    %71 = vector.broadcast %60 : vector<1x128xf32> to vector<8x128xf32>
    %72 = arith.mulf %62, %71 : vector<8x128xf32>
    %73 = arith.addf %58, %72 : vector<8x128xf32>
    %74 = vector.broadcast %59 : vector<1x128xf32> to vector<8x128xf32>
    %75 = arith.mulf %64, %74 : vector<8x128xf32>
    %76 = arith.subf %73, %75 : vector<8x128xf32>
    %77 = arith.index_cast %c0_i32 : i32 to index
    %c0_31 = arith.constant 0 : index
    %c0_32 = arith.constant 0 : index
    %c0_33 = arith.constant 0 : index
    %78 = vector.load %arg4[%77, %c0_31, %c0_32, %c0_33] : memref<2x2x8x128xf32, #tpu.memory_space<vmem>>, vector<1x1x8x128xf32>
    %79 = vector.shape_cast %78 : vector<1x1x8x128xf32> to vector<8x128xf32>
    %80 = vector.shape_cast %70 : vector<8x128xf32> to vector<1x1x8x128xf32>
    tpu.vector_store %arg4[%77, %c0_31, %c0_32, %c0_33], %80 {strides = array<i32>} : memref<2x2x8x128xf32, #tpu.memory_space<vmem>>, vector<1x1x8x128xf32>,
    %81 = arith.index_cast %c0_i32 : i32 to index
    %c1_34 = arith.constant 1 : index
    %c0_35 = arith.constant 0 : index
    %c0_36 = arith.constant 0 : index
    %82 = vector.load %arg4[%81, %c1_34, %c0_35, %c0_36] : memref<2x2x8x128xf32, #tpu.memory_space<vmem>>, vector<1x1x8x128xf32>
    %83 = vector.shape_cast %82 : vector<1x1x8x128xf32> to vector<8x128xf32>
    %84 = vector.shape_cast %76 : vector<8x128xf32> to vector<1x1x8x128xf32>
    tpu.vector_store %arg4[%81, %c1_34, %c0_35, %c0_36], %84 {strides = array<i32>} : memref<2x2x8x128xf32, #tpu.memory_space<vmem>>, vector<1x1x8x128xf32>,
    %c1_i32 = arith.constant 1 : i32
    %85 = arith.index_cast %c1_i32 : i32 to index
    %c0_37 = arith.constant 0 : index
    %c0_38 = arith.constant 0 : index
    %86 = vector.load %arg2[%85, %c0_37, %c0_38] : memref<2x8x128xf32, #tpu.memory_space<vmem>>, vector<1x8x128xf32>
    %87 = vector.shape_cast %86 : vector<1x8x128xf32> to vector<8x128xf32>
    %cst_39 = arith.constant 0.000000e+00 : f32
    %88 = vector.broadcast %cst_39 : f32 to vector<8x128xf32>
    %cst_40 = arith.constant 0.000000e+00 : f32
    %89 = vector.broadcast %cst_40 : f32 to vector<8x128xf32>
    %90 = vector.extract_strided_slice %87 {offsets = [0, 0], sizes = [1, 128], strides = [1, 1]} : vector<8x128xf32> to vector<1x128xf32>
    %91 = vector.extract_strided_slice %87 {offsets = [4, 0], sizes = [1, 128], strides = [1, 1]} : vector<8x128xf32> to vector<1x128xf32>
    %c0_41 = arith.constant 0 : index
    %c0_42 = arith.constant 0 : index
    %c0_43 = arith.constant 0 : index
    %c0_44 = arith.constant 0 : index
    %92 = vector.load %arg3[%c0_41, %c0_42, %c0_43, %c0_44] : memref<2x4x8x128xf32, #tpu.memory_space<vmem>>, vector<1x1x8x128xf32>
    %93 = vector.shape_cast %92 : vector<1x1x8x128xf32> to vector<8x128xf32>
    %c1_45 = arith.constant 1 : index
    %c0_46 = arith.constant 0 : index
    %c0_47 = arith.constant 0 : index
    %c0_48 = arith.constant 0 : index
    %94 = vector.load %arg3[%c1_45, %c0_46, %c0_47, %c0_48] : memref<2x4x8x128xf32, #tpu.memory_space<vmem>>, vector<1x1x8x128xf32>
    %95 = vector.shape_cast %94 : vector<1x1x8x128xf32> to vector<8x128xf32>
    %96 = vector.broadcast %90 : vector<1x128xf32> to vector<8x128xf32>
    %97 = arith.mulf %93, %96 : vector<8x128xf32>
    %98 = arith.addf %88, %97 : vector<8x128xf32>
    %99 = vector.broadcast %91 : vector<1x128xf32> to vector<8x128xf32>
    %100 = arith.mulf %95, %99 : vector<8x128xf32>
    %101 = arith.addf %98, %100 : vector<8x128xf32>
    %102 = vector.broadcast %91 : vector<1x128xf32> to vector<8x128xf32>
    %103 = arith.mulf %93, %102 : vector<8x128xf32>
    %104 = arith.addf %89, %103 : vector<8x128xf32>
    %105 = vector.broadcast %90 : vector<1x128xf32> to vector<8x128xf32>
    %106 = arith.mulf %95, %105 : vector<8x128xf32>
    %107 = arith.subf %104, %106 : vector<8x128xf32>
    %108 = vector.extract_strided_slice %87 {offsets = [1, 0], sizes = [1, 128], strides = [1, 1]} : vector<8x128xf32> to vector<1x128xf32>
    %109 = vector.extract_strided_slice %87 {offsets = [5, 0], sizes = [1, 128], strides = [1, 1]} : vector<8x128xf32> to vector<1x128xf32>
    %c0_49 = arith.constant 0 : index
    %c1_50 = arith.constant 1 : index
    %c0_51 = arith.constant 0 : index
    %c0_52 = arith.constant 0 : index
    %110 = vector.load %arg3[%c0_49, %c1_50, %c0_51, %c0_52] : memref<2x4x8x128xf32, #tpu.memory_space<vmem>>, vector<1x1x8x128xf32>
    %111 = vector.shape_cast %110 : vector<1x1x8x128xf32> to vector<8x128xf32>
    %c1_53 = arith.constant 1 : index
    %c1_54 = arith.constant 1 : index
    %c0_55 = arith.constant 0 : index
    %c0_56 = arith.constant 0 : index
    %112 = vector.load %arg3[%c1_53, %c1_54, %c0_55, %c0_56] : memref<2x4x8x128xf32, #tpu.memory_space<vmem>>, vector<1x1x8x128xf32>
    %113 = vector.shape_cast %112 : vector<1x1x8x128xf32> to vector<8x128xf32>
    %114 = vector.broadcast %108 : vector<1x128xf32> to vector<8x128xf32>
    %115 = arith.mulf %111, %114 : vector<8x128xf32>
    %116 = arith.addf %101, %115 : vector<8x128xf32>
    %117 = vector.broadcast %109 : vector<1x128xf32> to vector<8x128xf32>
    %118 = arith.mulf %113, %117 : vector<8x128xf32>
    %119 = arith.addf %116, %118 : vector<8x128xf32>
    %120 = vector.broadcast %109 : vector<1x128xf32> to vector<8x128xf32>
    %121 = arith.mulf %111, %120 : vector<8x128xf32>
    %122 = arith.addf %107, %121 : vector<8x128xf32>
    %123 = vector.broadcast %108 : vector<1x128xf32> to vector<8x128xf32>
    %124 = arith.mulf %113, %123 : vector<8x128xf32>
    %125 = arith.subf %122, %124 : vector<8x128xf32>
    %126 = vector.extract_strided_slice %87 {offsets = [2, 0], sizes = [1, 128], strides = [1, 1]} : vector<8x128xf32> to vector<1x128xf32>
    %127 = vector.extract_strided_slice %87 {offsets = [6, 0], sizes = [1, 128], strides = [1, 1]} : vector<8x128xf32> to vector<1x128xf32>
    %c0_57 = arith.constant 0 : index
    %c2_58 = arith.constant 2 : index
    %c0_59 = arith.constant 0 : index
    %c0_60 = arith.constant 0 : index
    %128 = vector.load %arg3[%c0_57, %c2_58, %c0_59, %c0_60] : memref<2x4x8x128xf32, #tpu.memory_space<vmem>>, vector<1x1x8x128xf32>
    %129 = vector.shape_cast %128 : vector<1x1x8x128xf32> to vector<8x128xf32>
    %c1_61 = arith.constant 1 : index
    %c2_62 = arith.constant 2 : index
    %c0_63 = arith.constant 0 : index
    %c0_64 = arith.constant 0 : index
    %130 = vector.load %arg3[%c1_61, %c2_62, %c0_63, %c0_64] : memref<2x4x8x128xf32, #tpu.memory_space<vmem>>, vector<1x1x8x128xf32>
    %131 = vector.shape_cast %130 : vector<1x1x8x128xf32> to vector<8x128xf32>
    %132 = vector.broadcast %126 : vector<1x128xf32> to vector<8x128xf32>
    %133 = arith.mulf %129, %132 : vector<8x128xf32>
    %134 = arith.addf %119, %133 : vector<8x128xf32>
    %135 = vector.broadcast %127 : vector<1x128xf32> to vector<8x128xf32>
    %136 = arith.mulf %131, %135 : vector<8x128xf32>
    %137 = arith.addf %134, %136 : vector<8x128xf32>
    %138 = vector.broadcast %127 : vector<1x128xf32> to vector<8x128xf32>
    %139 = arith.mulf %129, %138 : vector<8x128xf32>
    %140 = arith.addf %125, %139 : vector<8x128xf32>
    %141 = vector.broadcast %126 : vector<1x128xf32> to vector<8x128xf32>
    %142 = arith.mulf %131, %141 : vector<8x128xf32>
    %143 = arith.subf %140, %142 : vector<8x128xf32>
    %144 = vector.extract_strided_slice %87 {offsets = [3, 0], sizes = [1, 128], strides = [1, 1]} : vector<8x128xf32> to vector<1x128xf32>
    %145 = vector.extract_strided_slice %87 {offsets = [7, 0], sizes = [1, 128], strides = [1, 1]} : vector<8x128xf32> to vector<1x128xf32>
    %c0_65 = arith.constant 0 : index
    %c3_66 = arith.constant 3 : index
    %c0_67 = arith.constant 0 : index
    %c0_68 = arith.constant 0 : index
    %146 = vector.load %arg3[%c0_65, %c3_66, %c0_67, %c0_68] : memref<2x4x8x128xf32, #tpu.memory_space<vmem>>, vector<1x1x8x128xf32>
    %147 = vector.shape_cast %146 : vector<1x1x8x128xf32> to vector<8x128xf32>
    %c1_69 = arith.constant 1 : index
    %c3_70 = arith.constant 3 : index
    %c0_71 = arith.constant 0 : index
    %c0_72 = arith.constant 0 : index
    %148 = vector.load %arg3[%c1_69, %c3_70, %c0_71, %c0_72] : memref<2x4x8x128xf32, #tpu.memory_space<vmem>>, vector<1x1x8x128xf32>
    %149 = vector.shape_cast %148 : vector<1x1x8x128xf32> to vector<8x128xf32>
    %150 = vector.broadcast %144 : vector<1x128xf32> to vector<8x128xf32>
    %151 = arith.mulf %147, %150 : vector<8x128xf32>
    %152 = arith.addf %137, %151 : vector<8x128xf32>
    %153 = vector.broadcast %145 : vector<1x128xf32> to vector<8x128xf32>
    %154 = arith.mulf %149, %153 : vector<8x128xf32>
    %155 = arith.addf %152, %154 : vector<8x128xf32>
    %156 = vector.broadcast %145 : vector<1x128xf32> to vector<8x128xf32>
    %157 = arith.mulf %147, %156 : vector<8x128xf32>
    %158 = arith.addf %143, %157 : vector<8x128xf32>
    %159 = vector.broadcast %144 : vector<1x128xf32> to vector<8x128xf32>
    %160 = arith.mulf %149, %159 : vector<8x128xf32>
    %161 = arith.subf %158, %160 : vector<8x128xf32>
    %162 = arith.index_cast %c1_i32 : i32 to index
    %c0_73 = arith.constant 0 : index
    %c0_74 = arith.constant 0 : index
    %c0_75 = arith.constant 0 : index
    %163 = vector.load %arg4[%162, %c0_73, %c0_74, %c0_75] : memref<2x2x8x128xf32, #tpu.memory_space<vmem>>, vector<1x1x8x128xf32>
    %164 = vector.shape_cast %163 : vector<1x1x8x128xf32> to vector<8x128xf32>
    %165 = vector.shape_cast %155 : vector<8x128xf32> to vector<1x1x8x128xf32>
    tpu.vector_store %arg4[%162, %c0_73, %c0_74, %c0_75], %165 {strides = array<i32>} : memref<2x2x8x128xf32, #tpu.memory_space<vmem>>, vector<1x1x8x128xf32>,
    %166 = arith.index_cast %c1_i32 : i32 to index
    %c1_76 = arith.constant 1 : index
    %c0_77 = arith.constant 0 : index
    %c0_78 = arith.constant 0 : index
    %167 = vector.load %arg4[%166, %c1_76, %c0_77, %c0_78] : memref<2x2x8x128xf32, #tpu.memory_space<vmem>>, vector<1x1x8x128xf32>
    %168 = vector.shape_cast %167 : vector<1x1x8x128xf32> to vector<8x128xf32>
    %169 = vector.shape_cast %161 : vector<8x128xf32> to vector<1x1x8x128xf32>
    tpu.vector_store %arg4[%166, %c1_76, %c0_77, %c0_78], %169 {strides = array<i32>} : memref<2x2x8x128xf32, #tpu.memory_space<vmem>>, vector<1x1x8x128xf32>,
    %c2_i32 = arith.constant 2 : i32
    return
  }
  func.func @transform_0(%arg0: i32, %arg1: i32) -> (i32, i32, i32) {
    %c0_i32 = arith.constant 0 : i32
    %c0_i32_0 = arith.constant 0 : i32
    return %arg1, %c0_i32, %arg0 : i32, i32, i32
  }
  func.func @transform_1(%arg0: i32, %arg1: i32) -> (i32, i32, i32, i32) {
    %c0_i32 = arith.constant 0 : i32
    %c0_i32_0 = arith.constant 0 : i32
    %c0_i32_1 = arith.constant 0 : i32
    %c0_i32_2 = arith.constant 0 : i32
    return %c0_i32, %c0_i32_0, %c0_i32_1, %arg0 : i32, i32, i32, i32
  }
  func.func @transform_2(%arg0: i32, %arg1: i32) -> (i32, i32, i32, i32) {
    %c0_i32 = arith.constant 0 : i32
    %c0_i32_0 = arith.constant 0 : i32
    %c0_i32_1 = arith.constant 0 : i32
    return %arg1, %c0_i32, %c0_i32_0, %arg0 : i32, i32, i32, i32
  }
}

</mosaic_0001>

<llo_original>
// kernel: tpu_custom_call.1
$region0: #{tpu_custom_call.1}
  #allocation0 [shape = 'u32[]', space=smem, size = 0x4, offset = 0x4, fixed_abs, tag = 'smem constant byte address 0x4 - core index']
  #allocation1 [shape = 'u32[144,128]{1,0:T(1,128)}', space=vmem, size = 0x12000, scoped, tag = 'internal scratch']
  %s0 = inlined_call_operand.hbm [shape: f32[4,8,128], index: 0, kind: input, shape index: {}]
  %s1 = inlined_call_operand.hbm [shape: f32[2,4,8,128], index: 1, kind: input, shape index: {}]
  %s2 = inlined_call_operand.hbm [shape: f32[4,2,8,128], index: 2, kind: output, shape index: {}]
  %s3 = sld [smem:[#allocation0]]
  $region49: #{tpu_custom_call.1} parent=0
    _
  %s5 = ssub.s32 1, %s3
  %s6 = scalar_select 0, %s5, %s3
  $region1: #{tpu_custom_call.1} parent=0
    #allocation2 [shape = 'u8[16384]{0}', space=vmem, size = 0x4000, scoped, tag = 'input window, operand 0']
    #allocation3 [shape = 's32[2]{0}', space=sflag, size = 0x8, scoped, tag = 'scoped memory for tpu_custom_call.1']
    #allocation4 [shape = 's32[2]{0}', space=sflag, size = 0x8, scoped, tag = 'scoped memory for tpu_custom_call.1']
    #allocation5 [shape = 'u8[32768]{0}', space=vmem, size = 0x8000, scoped, tag = 'input window, operand 1, single buffered']
    #allocation6 [shape = 's32[1]{0}', space=sflag, size = 0x4, scoped, tag = 'scoped memory for tpu_custom_call.1']
    #allocation7 [shape = 'u8[32768]{0}', space=vmem, size = 0x8000, scoped, tag = 'output window, operand 0']
    %7 = vsyncpa [#allocation3], 0
    %s8 = scalar_lea.sflag [#allocation3], 1
    %9 = vsyncpa %s8, 0
    %10 = vsyncpa [#allocation6], 0
    %11 = vsyncpa [#allocation4], 0
    %s12 = scalar_lea.sflag [#allocation4], 1
    %13 = vsyncpa %s12, 0
    loop: start=0, step=1, limit=4
    $region2: #{tpu_custom_call.1} parent=1 // loop_pre_header
      _
    $region3: #{tpu_custom_call.1} parent=1 // loop_header
      %s15 = sphi 0, %s19
      %p16 = scmp.ge.s32.totalorder %s15, 4
      %s22 = sphi 0, %s34
      %s23 = sphi 0, %s30
      %s24 = sphi 0, %s22
      %s25 = sphi 0, %s23
      %s26 = sphi 0, %s24
      %s27 = sphi 0, %s25
      %s39 = sphi 0, %s41
      %s42 = sphi 0, %s39
      %s43 = sphi 0, %s42
      %s59 = sphi 0, %s43
      %s65 = sphi 0, %s67
      %s68 = sphi 0, %s65
      %s69 = sphi 0, %s68
      %s85 = sphi 0, %s69
      %s93 = sphi 0, %s95
      %s96 = sphi 0, %s93
      %s97 = sphi 0, %s96
      %s113 = sphi 0, %s97
    $region4: #{tpu_custom_call.1} parent=1 // loop_header_branch
      %18 = sbr.rel (%p16) target = $region8
    $region5: #{tpu_custom_call.1} parent=1 // loop_body
      %s20 = ssub.s32 %s15, 1
      %s21 = ssub.s32 %s15, 2
      %s28 = sadd.s32 1, %s23
      %p29 = scmp.ge.s32.totalorder %s28, 2
      %s30 = scalar_select %p29, 0, %s28
      %s31 = sadd.s32 1, %s22
      %s32 = scalar_select %p29, %s31, %s22
      %p33 = scmp.ge.s32.totalorder %s32, 1
      %s34 = scalar_select %p33, 0, %s32
      %s35 = ssub.s32 %s23, %s30
      %s36 = ssub.s32 %s22, %s34
      %s37 = sor.u32 %s35, %s36
      %p38 = scmp.eq.s32.totalorder %s37, 0
      %s40 = sadd.s32 %s39, 1
      %s41 = scalar_select %p38, %s39, %s40
      %p44 = pneg %p38
      %p45 = scmp.eq.s32.totalorder %s15, 1
      %p46 = por %p44, %p45
      %p47 = scmp.ne.s32.totalorder %s39, %s42
      %p48 = scmp.eq.s32.totalorder %s15, 0
      %p49 = por %p47, %p48
      %p50 = scmp.ne.s32.totalorder %s39, %s42
      %p51 = scmp.eq.s32.totalorder %s20, 1
      %p52 = por %p50, %p51
      %p53 = scmp.ne.s32.totalorder %s42, %s43
      %p54 = scmp.eq.s32.totalorder %s20, 0
      %p55 = por %p53, %p54
      %p56 = scmp.ne.s32.totalorder %s42, %s43
      %p57 = scmp.eq.s32.totalorder %s21, 1
      %p58 = por %p56, %p57
      %p60 = scmp.ne.s32.totalorder %s43, %s59
      %p61 = scmp.eq.s32.totalorder %s21, 0
      %p62 = por %p60, %p61
      %s63 = ssub.s32 %s22, %s34
      %p64 = scmp.eq.s32.totalorder %s63, 0
      %s66 = sadd.s32 %s65, 1
      %s67 = scalar_select %p64, %s65, %s66
      %p70 = pneg %p64
      %p71 = scmp.eq.s32.totalorder %s15, 1
      %p72 = por %p70, %p71
      %p73 = scmp.ne.s32.totalorder %s65, %s68
      %p74 = scmp.eq.s32.totalorder %s15, 0
      %p75 = por %p73, %p74
      %p76 = scmp.ne.s32.totalorder %s65, %s68
      %p77 = scmp.eq.s32.totalorder %s20, 1
      %p78 = por %p76, %p77
      %p79 = scmp.ne.s32.totalorder %s68, %s69
      %p80 = scmp.eq.s32.totalorder %s20, 0
      %p81 = por %p79, %p80
      %p82 = scmp.ne.s32.totalorder %s68, %s69
      %p83 = scmp.eq.s32.totalorder %s21, 1
      %p84 = por %p82, %p83
      %p86 = scmp.ne.s32.totalorder %s69, %s85
      %p87 = scmp.eq.s32.totalorder %s21, 0
      %p88 = por %p86, %p87
      %s89 = ssub.s32 %s23, %s30
      %s90 = ssub.s32 %s22, %s34
      %s91 = sor.u32 %s89, %s90
      %p92 = scmp.eq.s32.totalorder %s91, 0
      %s94 = sadd.s32 %s93, 1
      %s95 = scalar_select %p92, %s93, %s94
      %p98 = pneg %p92
      %p99 = scmp.eq.s32.totalorder %s15, 1
      %p100 = por %p98, %p99
      %p101 = scmp.ne.s32.totalorder %s93, %s96
      %p102 = scmp.eq.s32.totalorder %s15, 0
      %p103 = por %p101, %p102
      %p104 = scmp.ne.s32.totalorder %s93, %s96
      %p105 = scmp.eq.s32.totalorder %s20, 1
      %p106 = por %p104, %p105
      %p107 = scmp.ne.s32.totalorder %s96, %s97
      %p108 = scmp.eq.s32.totalorder %s20, 0
      %p109 = por %p107, %p108
      %p110 = scmp.ne.s32.totalorder %s96, %s97
      %p111 = scmp.eq.s32.totalorder %s21, 1
      %p112 = por %p110, %p111
      %p114 = scmp.ne.s32.totalorder %s97, %s113
      %p115 = scmp.eq.s32.totalorder %s21, 0
      %p116 = por %p114, %p115
      %p117 = scmp.le.s32.totalorder 1, %s15
      %p118 = scmp.lt.s32.totalorder %s15, 3
      %p119 = pnand %p117, %p118
      %p120 = pneg %p119
      // Predicated region
      $region9: #{tpu_custom_call.1} parent=5 // pred_check
        _
      $region10: #{tpu_custom_call.1} parent=5 // pred_check_branch
        %122 = sbr.rel (%p119) target = $region12
      $region11: #{tpu_custom_call.1} parent=5 // pred_region
        %s123 = ssub.s32 %s15, 1
        // Predicated region
        $region13: #{tpu_custom_call.1} parent=11 // pred_check
          %p124 = pneg %p81
        $region14: #{tpu_custom_call.1} parent=11 // pred_check_branch
          %126 = sbr.rel (%p124) target = $region16
        $region15: #{tpu_custom_call.1} parent=11 // pred_region
          %s128 = ssub.s32 1024, 1024
          %129 = vsyncadd [#allocation6], %s128
          %s130 = smul.addr %s24, 128
          %s131 = scalar_lea.hbm %s1, %s130
          %s132 = sshll.u32 [#allocation5], 4
          %s133 = int_to_ptr.vmem [resolvable:$true] %s132
          %138 = dma.hbm_to_vmem [thread:$0]  %s131, 1024, %s133, [#allocation6], 128, 128, 8
        $region16: #{tpu_custom_call.1} parent=11 // pred_fallthru
          _
      $region12: #{tpu_custom_call.1} parent=5 // pred_fallthru
        _
      %p139 = scmp.lt.s32.totalorder %s15, 2
      // Predicated region
      $region17: #{tpu_custom_call.1} parent=5 // pred_check
        %p140 = pneg %p139
      $region18: #{tpu_custom_call.1} parent=5 // pred_check_branch
        %142 = sbr.rel (%p140) target = $region20
      $region19: #{tpu_custom_call.1} parent=5 // pred_region
        // Predicated region
        $region21: #{tpu_custom_call.1} parent=19 // pred_check
          %p143 = pneg %p49
        $region22: #{tpu_custom_call.1} parent=19 // pred_check_branch
          %145 = sbr.rel (%p143) target = $region24
        $region23: #{tpu_custom_call.1} parent=19 // pred_region
          %s146 = sand.u32 %s39, 1
          %s147 = scalar_lea.sflag [#allocation3], %s146
          %s148 = sand.u32 %s39, 1
          %s149 = smul.addr %s148, 16
          %s150 = scalar_lea.vmem [#allocation2], %s149
          %s151 = smul.u32 2, %s23
          %s153 = ssub.s32 256, 256
          %154 = vsyncadd %s147, %s153
          %s155 = sadd.s32 %s22, %s151
          %s156 = smul.addr %s155, 128
          %s157 = scalar_lea.hbm %s0, %s156
          %s158 = sshll.u32 %s150, 4
          %s159 = int_to_ptr.vmem [resolvable:$true] %s158
          %164 = dma.hbm_to_vmem [thread:$0]  %s157, 256, %s159, %s147, 128, 128, 8
        $region24: #{tpu_custom_call.1} parent=19 // pred_fallthru
          _
      $region20: #{tpu_custom_call.1} parent=5 // pred_fallthru
        _
      %p165 = scmp.le.s32.totalorder 1, %s15
      %p166 = scmp.lt.s32.totalorder %s15, 3
      %p167 = pnand %p165, %p166
      %p168 = pneg %p167
      // Predicated region
      $region25: #{tpu_custom_call.1} parent=5 // pred_check
        _
      $region26: #{tpu_custom_call.1} parent=5 // pred_check_branch
        %170 = sbr.rel (%p167) target = $region28
      $region27: #{tpu_custom_call.1} parent=5 // pred_region
        %s171 = ssub.s32 %s15, 1
        %s172 = sand.u32 %s42, 1
        %s173 = scalar_lea.sflag [#allocation3], %s172
        %s174 = sand.u32 %s42, 1
        %s175 = smul.addr %s174, 16
        %s176 = scalar_lea.vmem [#allocation2], %s175
        // Predicated region
        $region29: #{tpu_custom_call.1} parent=27 // pred_check
          %p177 = pneg %p55
        $region30: #{tpu_custom_call.1} parent=27 // pred_check_branch
          %179 = sbr.rel (%p177) target = $region32
        $region31: #{tpu_custom_call.1} parent=27 // pred_region
          %180 = dma.done %s173, 256
        $region32: #{tpu_custom_call.1} parent=27 // pred_fallthru
          _
        // Predicated region
        $region33: #{tpu_custom_call.1} parent=27 // pred_check
          %p181 = pneg %p81
        $region34: #{tpu_custom_call.1} parent=27 // pred_check_branch
          %183 = sbr.rel (%p181) target = $region36
        $region35: #{tpu_custom_call.1} parent=27 // pred_region
          %184 = dma.done [#allocation6], 1024
        $region36: #{tpu_custom_call.1} parent=27 // pred_fallthru
          _
        %s185 = sand.u32 %s42, 1
        %s186 = scalar_lea.sflag [#allocation3], %s185
        %s187 = sand.u32 %s42, 1
        %s188 = smul.addr %s187, 16
        %s189 = scalar_lea.vmem [#allocation2], %s188
        %p190 = pneg %p55
        %p191 = pneg %p52
        %p192 = pneg %p81
        %p193 = pneg %p78
        %p194 = pneg %p109
        %p195 = pneg %p106
        %s196 = sand.u32 %s96, 1
        %s197 = scalar_lea.sflag [#allocation4], %s196
        %s198 = sand.u32 %s96, 1
        %s199 = smul.addr %s198, 32
        %s200 = scalar_lea.vmem [#allocation7], %s199
        %s201 = smul.u32 2, %s25
        %s202 = smul.u32 2, %s25
        %v203 = vld [vmem:[%s176] sm:$0xff]
        %v204 = vld [vmem:[#allocation5] sm:$0xff]
        %s205 = scalar_lea.vmem [#allocation5], 32
        %v206 = vld [vmem:[%s205] sm:$0xff]
        %v207 = vlaneseq
        %v208 = vshrl.u32 %v207, 7
        %v209 = vsub.s32 0, %v208
        %v210 = vrot.slane %v203, %v209
        %v211 = vmul.f32 %v204, %v210
        %v212 = vadd.f32 %v211, 0.0
        %v213 = vlaneseq
        %v214 = vshrl.u32 %v213, 7
        %v215 = vsub.s32 4, %v214
        %v216 = vrot.slane %v203, %v215
        %v217 = vmul.f32 %v206, %v216
        %v218 = vadd.f32 %v212, %v217
        %v219 = vmul.f32 %v204, %v216
        %v220 = vadd.f32 %v219, 0.0
        %v221 = vmul.f32 %v206, %v210
        %v222 = vsub.f32 %v220, %v221
        %s223 = scalar_lea.vmem [#allocation5], 8
        %v224 = vld [vmem:[%s223] sm:$0xff]
        %s225 = scalar_lea.vmem [#allocation5], 40
        %v226 = vld [vmem:[%s225] sm:$0xff]
        %v227 = vlaneseq
        %v228 = vshrl.u32 %v227, 7
        %v229 = vsub.s32 1, %v228
        %v230 = vrot.slane %v203, %v229
        %v231 = vmul.f32 %v224, %v230
        %v232 = vadd.f32 %v218, %v231
        %v233 = vlaneseq
        %v234 = vshrl.u32 %v233, 7
        %v235 = vsub.s32 5, %v234
        %v236 = vrot.slane %v203, %v235
        %v237 = vmul.f32 %v226, %v236
        %v238 = vadd.f32 %v232, %v237
        %v239 = vmul.f32 %v224, %v236
        %v240 = vadd.f32 %v222, %v239
        %v241 = vmul.f32 %v226, %v230
        %v242 = vsub.f32 %v240, %v241
        %s243 = scalar_lea.vmem [#allocation5], 16
        %v244 = vld [vmem:[%s243] sm:$0xff]
        %s245 = scalar_lea.vmem [#allocation5], 48
        %v246 = vld [vmem:[%s245] sm:$0xff]
        %v247 = vlaneseq
        %v248 = vshrl.u32 %v247, 7
        %v249 = vsub.s32 2, %v248
        %v250 = vrot.slane %v203, %v249
        %v251 = vmul.f32 %v244, %v250
        %v252 = vadd.f32 %v238, %v251
        %v253 = vlaneseq
        %v254 = vshrl.u32 %v253, 7
        %v255 = vsub.s32 6, %v254
        %v256 = vrot.slane %v203, %v255
        %v257 = vmul.f32 %v246, %v256
        %v258 = vadd.f32 %v252, %v257
        %v259 = vmul.f32 %v244, %v256
        %v260 = vadd.f32 %v242, %v259
        %v261 = vmul.f32 %v246, %v250
        %v262 = vsub.f32 %v260, %v261
        %s263 = scalar_lea.vmem [#allocation5], 24
        %v264 = vld [vmem:[%s263] sm:$0xff]
        %s265 = scalar_lea.vmem [#allocation5], 56
        %v266 = vld [vmem:[%s265] sm:$0xff]
        %v267 = vlaneseq
        %v268 = vshrl.u32 %v267, 7
        %v269 = vsub.s32 3, %v268
        %v270 = vrot.slane %v203, %v269
        %v271 = vmul.f32 %v264, %v270
        %v272 = vadd.f32 %v258, %v271
        %v273 = vlaneseq
        %v274 = vshrl.u32 %v273, 7
        %v275 = vsub.s32 7, %v274
        %v276 = vrot.slane %v203, %v275
        %v277 = vmul.f32 %v266, %v276
        %v278 = vadd.f32 %v272, %v277
        %v279 = vmul.f32 %v264, %v276
        %v280 = vadd.f32 %v262, %v279
        %v281 = vmul.f32 %v266, %v270
        %v282 = vsub.f32 %v280, %v281
        %283 = vst [vmem:[%s200] sm:$0xff] %v278
        %s284 = scalar_lea.vmem %s200, 8 [#allocation7]
        %285 = vst [vmem:[%s284] sm:$0xff] %v282
        %s286 = scalar_lea.vmem %s176, 8 [#allocation2]
        %v287 = vld [vmem:[%s286] sm:$0xff]
        %v288 = vld [vmem:[#allocation5] sm:$0xff]
        %v289 = vld [vmem:[%s205] sm:$0xff]
        %v290 = vlaneseq
        %v291 = vshrl.u32 %v290, 7
        %v292 = vsub.s32 0, %v291
        %v293 = vrot.slane %v287, %v292
        %v294 = vmul.f32 %v288, %v293
        %v295 = vadd.f32 %v294, 0.0
        %v296 = vlaneseq
        %v297 = vshrl.u32 %v296, 7
        %v298 = vsub.s32 4, %v297
        %v299 = vrot.slane %v287, %v298
        %v300 = vmul.f32 %v289, %v299
        %v301 = vadd.f32 %v295, %v300
        %v302 = vmul.f32 %v288, %v299
        %v303 = vadd.f32 %v302, 0.0
        %v304 = vmul.f32 %v289, %v293
        %v305 = vsub.f32 %v303, %v304
        %v306 = vld [vmem:[%s223] sm:$0xff]
        %v307 = vld [vmem:[%s225] sm:$0xff]
        %v308 = vlaneseq
        %v309 = vshrl.u32 %v308, 7
        %v310 = vsub.s32 1, %v309
        %v311 = vrot.slane %v287, %v310
        %v312 = vmul.f32 %v306, %v311
        %v313 = vadd.f32 %v301, %v312
        %v314 = vlaneseq
        %v315 = vshrl.u32 %v314, 7
        %v316 = vsub.s32 5, %v315
        %v317 = vrot.slane %v287, %v316
        %v318 = vmul.f32 %v307, %v317
        %v319 = vadd.f32 %v313, %v318
        %v320 = vmul.f32 %v306, %v317
        %v321 = vadd.f32 %v305, %v320
        %v322 = vmul.f32 %v307, %v311
        %v323 = vsub.f32 %v321, %v322
        %v324 = vld [vmem:[%s243] sm:$0xff]
        %v325 = vld [vmem:[%s245] sm:$0xff]
        %v326 = vlaneseq
        %v327 = vshrl.u32 %v326, 7
        %v328 = vsub.s32 2, %v327
        %v329 = vrot.slane %v287, %v328
        %v330 = vmul.f32 %v324, %v329
        %v331 = vadd.f32 %v319, %v330
        %v332 = vlaneseq
        %v333 = vshrl.u32 %v332, 7
        %v334 = vsub.s32 6, %v333
        %v335 = vrot.slane %v287, %v334
        %v336 = vmul.f32 %v325, %v335
        %v337 = vadd.f32 %v331, %v336
        %v338 = vmul.f32 %v324, %v335
        %v339 = vadd.f32 %v323, %v338
        %v340 = vmul.f32 %v325, %v329
        %v341 = vsub.f32 %v339, %v340
        %v342 = vld [vmem:[%s263] sm:$0xff]
        %v343 = vld [vmem:[%s265] sm:$0xff]
        %v344 = vlaneseq
        %v345 = vshrl.u32 %v344, 7
        %v346 = vsub.s32 3, %v345
        %v347 = vrot.slane %v287, %v346
        %v348 = vmul.f32 %v342, %v347
        %v349 = vadd.f32 %v337, %v348
        %v350 = vlaneseq
        %v351 = vshrl.u32 %v350, 7
        %v352 = vsub.s32 7, %v351
        %v353 = vrot.slane %v287, %v352
        %v354 = vmul.f32 %v343, %v353
        %v355 = vadd.f32 %v349, %v354
        %v356 = vmul.f32 %v342, %v353
        %v357 = vadd.f32 %v341, %v356
        %v358 = vmul.f32 %v343, %v347
        %v359 = vsub.f32 %v357, %v358
        %s360 = scalar_lea.vmem %s200, 16 [#allocation7]
        %361 = vst [vmem:[%s360] sm:$0xff] %v355
        %s362 = scalar_lea.vmem %s200, 24 [#allocation7]
        %363 = vst [vmem:[%s362] sm:$0xff] %v359
        %s364 = sand.u32 %s96, 1
        %s365 = scalar_lea.sflag [#allocation4], %s364
        %s366 = sand.u32 %s96, 1
        %s367 = smul.addr %s366, 32
        %s368 = scalar_lea.vmem [#allocation7], %s367
        // Predicated region
        $region37: #{tpu_custom_call.1} parent=27 // pred_check
          %p369 = pneg %p106
        $region38: #{tpu_custom_call.1} parent=27 // pred_check_branch
          %371 = sbr.rel (%p369) target = $region40
        $region39: #{tpu_custom_call.1} parent=27 // pred_region
          %s372 = smul.u32 2, %s25
          %s374 = ssub.s32 512, 512
          %375 = vsyncadd %s365, %s374
          %s376 = smul.addr %s372, 2
          %s377 = sadd.s32 %s24, %s376
          %s378 = smul.addr %s377, 128
          %s379 = scalar_lea.hbm %s2, %s378
          %s380 = sshll.u32 %s368, 4
          %s381 = int_to_ptr.vmem [resolvable:$true] %s380
          %386 = dma.vmem_to_hbm [thread:$0]  %s381, 512, %s379, %s365, 128, 128, 8
        $region40: #{tpu_custom_call.1} parent=27 // pred_fallthru
          _
      $region28: #{tpu_custom_call.1} parent=5 // pred_fallthru
        _
      %p387 = scmp.le.s32.totalorder 2, %s15
      // Predicated region
      $region41: #{tpu_custom_call.1} parent=5 // pred_check
        %p388 = pneg %p387
      $region42: #{tpu_custom_call.1} parent=5 // pred_check_branch
        %390 = sbr.rel (%p388) target = $region44
      $region43: #{tpu_custom_call.1} parent=5 // pred_region
        %s391 = ssub.s32 %s15, 2
        // Predicated region
        $region45: #{tpu_custom_call.1} parent=43 // pred_check
          %p392 = pneg %p112
        $region46: #{tpu_custom_call.1} parent=43 // pred_check_branch
          %394 = sbr.rel (%p392) target = $region48
        $region47: #{tpu_custom_call.1} parent=43 // pred_region
          %s395 = sand.u32 %s97, 1
          %s396 = scalar_lea.sflag [#allocation4], %s395
          %s397 = sand.u32 %s97, 1
          %s398 = smul.addr %s397, 32
          %s399 = scalar_lea.vmem [#allocation7], %s398
          %400 = dma.done %s396, 512
        $region48: #{tpu_custom_call.1} parent=43 // pred_fallthru
          _
      $region44: #{tpu_custom_call.1} parent=5 // pred_fallthru
        _
    $region6: #{tpu_custom_call.1} parent=1 // loop_footer
      %s19 = sadd.s32 1, %s15
    $region7: #{tpu_custom_call.1} parent=1 // loop_footer_branch
      %14 = sbr.rel target = $region3
    $region8: #{tpu_custom_call.1} parent=1 // loop_exit
      _
    %401 = vsyncpa [#allocation3], 1
    %s402 = scalar_lea.sflag [#allocation3], 1
    %403 = vsyncpa %s402, 1
    %404 = vsyncpa [#allocation6], 1
    %405 = vsyncpa [#allocation4], 1
    %s406 = scalar_lea.sflag [#allocation4], 1
    %407 = vsyncpa %s406, 1

</llo_original>
